<compile_context>
chip_gen: v6e
topology: v6e:2x2x1
jax: 0.10.0
libtpu: 0.0.40
codegen_flags: <defaults>
</compile_context>

<pallas_src>
import jax
import jax.numpy as jnp
from jax import lax
from jax.experimental import pallas as pl
from jax.experimental.pallas import tpu as pltpu

LANE = 128
MM_DTYPE = jnp.bfloat16          # MXU operand dtype (accumulation stays f32)
MAX_ROWS_PER_BLOCK = 1024        # Nb*H rows per grid step; tiny vs 64 MiB v7x VMEM


def bottleneck_kernel(x_ref, w1_ref, b1_ref, w2_ref, b2_ref, w3_ref, b3_ref, o_ref):
    # x_ref: (Nb, H, Lin) f32, packed lanes: lane = w*Cin + c (zero-padded to 128k).
    Nb, H, Lin = x_ref.shape
    Lmid = w1_ref.shape[1]
    Lout = w3_ref.shape[1]
    rows = Nb * H

    x = x_ref[...]                                   # (Nb, H, Lin) f32
    x2d = x.reshape(rows, Lin)                       # free (leading-dim collapse)

    # ---- conv1 (1x1, BN1 scale folded into weight) + shift + tanh ----------
    h1 = jnp.dot(x2d.astype(MM_DTYPE), w1_ref[...],
                 preferred_element_type=jnp.float32)          # (rows, Lmid)
    h1 = jnp.tanh(h1 + b1_ref[...])                           # f32 (v5e-safe)

    # ---- conv2 (3x3, stride 1, pad 1, BN2 scale folded) + shift + tanh -----
    # dx taps live inside the block-tridiagonal weights; dy taps are 3 shifted
    # views accumulated with 3 dots (no rows x 9K im2col temporary).
    img = h1.reshape(Nb, H, Lmid)
    zrow = jnp.zeros((Nb, 1, Lmid), jnp.float32)
    h1_up = jnp.concatenate([zrow, img[:, :H - 1]], axis=1)   # row i <- img row i-1
    h1_dn = jnp.concatenate([img[:, 1:], zrow], axis=1)       # row i <- img row i+1

    acc = jnp.dot(h1_up.reshape(rows, Lmid).astype(MM_DTYPE), w2_ref[0],
                  preferred_element_type=jnp.float32)
    acc = acc + jnp.dot(img.reshape(rows, Lmid).astype(MM_DTYPE), w2_ref[1],
                        preferred_element_type=jnp.float32)
    acc = acc + jnp.dot(h1_dn.reshape(rows, Lmid).astype(MM_DTYPE), w2_ref[2],
                        preferred_element_type=jnp.float32)
    h2 = jnp.tanh(acc + b2_ref[...])                          # (rows, Lmid) f32

    # ---- conv3 (1x1, BN3 scale folded) + shift + residual + tanh -----------
    h3 = jnp.dot(h2.astype(MM_DTYPE), w3_ref[...],
                 preferred_element_type=jnp.float32)          # (rows, Lout)
    out = jnp.tanh(h3 + b3_ref[...] + x2d)   # identity path (downsample=None)
    o_ref[...] = out.reshape(Nb, H, Lout).astype(o_ref.dtype)


def _round_up(v, m):
    return (v + m - 1) // m * m


def _pick_nb(n, h):
    """Largest Nb dividing N with Nb*H <= cap, preferring grid >= 2 (v7x megacore)."""
    best = 1
    for cand in range(1, n + 1):
        if n % cand == 0 and cand * h <= MAX_ROWS_PER_BLOCK and (n // cand >= 2 or n == 1):
            best = cand
    return best


def bottleneck_forward(x_nchw, params):
    """x_nchw: (N, Cin, H, W) float32. Returns (N, Cout, H, W) float32."""
    w1, s1, b1, w2, s2, b2, w3, s3, b3 = params
    N, Cin, H, W = x_nchw.shape
    width = w1.shape[1]
    Cout = w3.shape[1]
    assert Cin == Cout, "downsample=None path requires in_channel == out_channel*expansion"

    # Packed (space-to-depth) lane widths.
    Lin, Lmid, Lout = W * Cin, W * width, W * Cout
    Lin_p, Lout_p = _round_up(Lin, LANE), _round_up(Lout, LANE)
    assert Lin_p == Lout_p

    # ---- one-time repacking in the wrapper (outside the kernel) ------------
    # x: NCHW -> NHWC -> pack W into lanes (pure reshape of real data).
    x = jnp.transpose(x_nchw, (0, 2, 3, 1)).reshape(N, H, Lin)
    if Lin_p > Lin:
        x = jnp.pad(x, ((0, 0), (0, 0), (0, Lin_p - Lin)))

    eye_w = jnp.eye(W, dtype=jnp.float32)

    # conv1: block-diagonal (Lin, Lmid), BN1 scale folded into output columns.
    w1p = jnp.kron(eye_w, w1 * s1)
    if Lin_p > Lin:
        w1p = jnp.pad(w1p, ((0, Lin_p - Lin), (0, 0)))
    w1p = w1p.astype(MM_DTYPE)

    # conv2: one block-tridiagonal (Lmid, Lmid) matrix per vertical tap dy;
    # horizontal taps dx live in the off-diagonal blocks (zero W-boundaries free).
    def tri(dy):
        m = jnp.zeros((Lmid, Lmid), jnp.float32)
        for dx in (-1, 0, 1):
            m = m + jnp.kron(jnp.eye(W, k=-dx, dtype=jnp.float32), w2[dy, dx + 1] * s2)
        return m
    w2p = jnp.stack([tri(dy) for dy in range(3)]).astype(MM_DTYPE)   # (3, Lmid, Lmid)

    # conv3: block-diagonal (Lmid, Lout), BN3 scale folded in.
    w3p = jnp.kron(eye_w, w3 * s3)
    if Lout_p > Lout:
        w3p = jnp.pad(w3p, ((0, 0), (0, Lout_p - Lout)))
    w3p = w3p.astype(MM_DTYPE)

    # BN shifts tiled over the packed W groups.
    b1p = jnp.tile(b1, (1, W)).astype(jnp.float32)                    # (1, Lmid)
    b2p = jnp.tile(b2, (1, W)).astype(jnp.float32)                    # (1, Lmid)
    b3p = jnp.tile(b3, (1, W))
    if Lout_p > Lout:
        b3p = jnp.pad(b3p, ((0, 0), (0, Lout_p - Lout)))
    b3p = b3p.astype(jnp.float32)                                     # (1, Lout_p)

    Nb = _pick_nb(N, H)

    def full_spec(a):
        nd = a.ndim
        return pl.BlockSpec(a.shape, lambda n, _nd=nd: (0,) * _nd)

    out = pl.pallas_call(
        bottleneck_kernel,
        out_shape=jax.ShapeDtypeStruct((N, H, Lout_p), jnp.float32),
        grid_spec=pltpu.PrefetchScalarGridSpec(
            num_scalar_prefetch=0,
            grid=(N // Nb,),
            in_specs=[
                pl.BlockSpec((Nb, H, Lin_p), lambda n: (n, 0, 0)),
                full_spec(w1p), full_spec(b1p),
                full_spec(w2p), full_spec(b2p),
                full_spec(w3p), full_spec(b3p),
            ],
            out_specs=pl.BlockSpec((Nb, H, Lout_p), lambda n: (n, 0, 0)),
        ),
        compiler_params=pltpu.CompilerParams(
            dimension_semantics=("parallel",)),
    )(x, w1p, b1p, w2p, b2p, w3p, b3p)

    out = out[..., :Lout].reshape(N, H, W, Cout)    # unpack lanes (no-op slice here)
    return jnp.transpose(out, (0, 3, 1, 2))         # back to NCHW


def ref_forward_nhwc(x, w1, s1, b1, w2, s2, b2, w3, s3, b3, mm_dtype):
    """Pure-JAX NHWC reference with configurable matmul dtype."""
    def conv(h, w, pad):
        dn = lax.conv_dimension_numbers(h.shape, w.shape, ('NHWC', 'HWIO', 'NHWC'))
        return lax.conv_general_dilated(h.astype(mm_dtype), w.astype(mm_dtype),
                                        (1, 1), pad, dimension_numbers=dn,
                                        preferred_element_type=jnp.float32,
                                        precision=lax.Precision.HIGHEST)

    h = conv(x, w1.reshape(1, 1, *w1.shape), 'VALID')
    h = jnp.tanh(h * s1 + b1)
    h = conv(h, w2, ((1, 1), (1, 1)))
    h = jnp.tanh(h * s2 + b2)
    h = conv(h, w3.reshape(1, 1, *w3.shape), 'VALID')
    h = h * s3 + b3
    return jnp.tanh(h + x)


if __name__ == "__main__":
    key = jax.random.PRNGKey(0)
    keys = jax.random.split(key, 16)

    # Module hyperparameters (downsample=None -> in_channel == out_channel*expansion).
    N, H, W = 4, 16, 16
    out_channel = 4
    expansion = 4
    in_channel = out_channel * expansion                              # 16
    groups, width_per_group = 1, 64
    width = int(out_channel * (width_per_group / 64.0)) * groups      # 4
    Cout = out_channel * expansion                                    # 16
    eps = 1e-5

    # Deterministic parameter init (shapes follow the PyTorch module).
    w1 = 0.2 * jax.random.normal(keys[0], (in_channel, width), jnp.float32)   # conv1 1x1
    w2 = 0.2 * jax.random.normal(keys[1], (3, 3, width, width), jnp.float32)  # conv2 HWIO
    w3 = 0.2 * jax.random.normal(keys[2], (width, Cout), jnp.float32)         # conv3 1x1

    def bn_fold(kg, kb, km, kv, C):
        gamma = 1.0 + 0.1 * jax.random.normal(kg, (1, C), jnp.float32)
        beta = 0.1 * jax.random.normal(kb, (1, C), jnp.float32)
        mean = 0.1 * jax.random.normal(km, (1, C), jnp.float32)
        var = jnp.abs(jax.random.normal(kv, (1, C), jnp.float32)) + 0.5
        scale = gamma / jnp.sqrt(var + eps)
        shift = beta - mean * scale
        return scale, shift

    s1, b1 = bn_fold(keys[3], keys[4], keys[5], keys[6], width)
    s2, b2 = bn_fold(keys[7], keys[8], keys[9], keys[10], width)
    s3, b3 = bn_fold(keys[11], keys[12], keys[13], keys[14], Cout)

    x_nchw = jax.random.normal(keys[15], (N, in_channel, H, W), jnp.float32)

    params = (w1, s1, b1, w2, s2, b2, w3, s3, b3)
    y = bottleneck_forward(x_nchw, params)
    y = jax.block_until_ready(y)

    x_nhwc = jnp.transpose(x_nchw, (0, 2, 3, 1))

    # (a) reference with the same BN-fold + bf16 matmul operands -> tight tolerance.
    ones1, ones2, ones3 = jnp.ones_like(s1), jnp.ones_like(s2), jnp.ones_like(s3)
    y_ref = jnp.transpose(
        ref_forward_nhwc(x_nhwc, w1 * s1, ones1, b1, w2 * s2, ones2, b2,
                         w3 * s3, ones3, b3, MM_DTYPE), (0, 3, 1, 2))
    err = float(jnp.max(jnp.abs(y - y_ref)))
    assert jnp.allclose(y, y_ref, atol=5e-3, rtol=5e-3), f"max_err_bf16ref={err}"

    # (b) full-f32 unfolded reference (original module semantics) -> loose tolerance
    #     covering only the bf16 MXU-operand rounding.
    y_ref32 = jnp.transpose(
        ref_forward_nhwc(x_nhwc, w1, s1, b1, w2, s2, b2, w3, s3, b3, jnp.float32),
        (0, 3, 1, 2))
    err32 = float(jnp.max(jnp.abs(y - y_ref32)))
    assert jnp.allclose(y, y_ref32, atol=4e-2, rtol=4e-2), f"max_err_f32ref={err32}"

    print("KERNEL_OK")
</pallas_src>

<mosaic_0001>
module attributes {stable_mosaic.version = 11 : i64} {
  func.func @bottleneck_kernel(%arg0: i32, %arg1: memref<2x16x256xf32, #tpu.memory_space<vmem>>, %arg2: memref<256x64xbf16, #tpu.memory_space<vmem>>, %arg3: memref<1x64xf32, #tpu.memory_space<vmem>>, %arg4: memref<3x64x64xbf16, #tpu.memory_space<vmem>>, %arg5: memref<1x64xf32, #tpu.memory_space<vmem>>, %arg6: memref<64x256xbf16, #tpu.memory_space<vmem>>, %arg7: memref<1x256xf32, #tpu.memory_space<vmem>>, %arg8: memref<2x16x256xf32, #tpu.memory_space<vmem>>) attributes {dimension_semantics = [#tpu.dimension_semantics<parallel>], iteration_bounds = array<i64: 2>, scalar_prefetch = 0 : i64, scratch_operands = 0 : i64, tpu.core_type = #tpu.core_type<tc>, window_params = [{transform_indices = @transform_0, window_bounds = array<i64: 2, 16, 256>}, {pipeline_mode = #tpu.pipeline_mode<synchronous>, transform_indices = @transform_1, window_bounds = array<i64: 256, 64>}, {pipeline_mode = #tpu.pipeline_mode<synchronous>, transform_indices = @transform_2, window_bounds = array<i64: 1, 64>}, {pipeline_mode = #tpu.pipeline_mode<synchronous>, transform_indices = @transform_3, window_bounds = array<i64: 3, 64, 64>}, {pipeline_mode = #tpu.pipeline_mode<synchronous>, transform_indices = @transform_4, window_bounds = array<i64: 1, 64>}, {pipeline_mode = #tpu.pipeline_mode<synchronous>, transform_indices = @transform_5, window_bounds = array<i64: 64, 256>}, {pipeline_mode = #tpu.pipeline_mode<synchronous>, transform_indices = @transform_6, window_bounds = array<i64: 1, 256>}, {transform_indices = @transform_7, window_bounds = array<i64: 2, 16, 256>}]} {
    %c0 = arith.constant 0 : index
    %c0_0 = arith.constant 0 : index
    %c0_1 = arith.constant 0 : index
    %0 = vector.load %arg1[%c0, %c0_0, %c0_1] : memref<2x16x256xf32, #tpu.memory_space<vmem>>, vector<2x16x256xf32>
    %1 = vector.shape_cast %0 : vector<2x16x256xf32> to vector<32x256xf32>
    %2 = arith.truncf %1 : vector<32x256xf32> to vector<32x256xbf16>
    %c0_2 = arith.constant 0 : index
    %c0_3 = arith.constant 0 : index
    %3 = vector.load %arg2[%c0_2, %c0_3] : memref<256x64xbf16, #tpu.memory_space<vmem>>, vector<256x64xbf16>
    %cst = arith.constant dense<0.000000e+00> : vector<32x64xf32>
    %4 = tpu.matmul %2, %3, %cst {dimension_numbers = #tpu.dot_dimension_numbers<[1], [0], [0], [1], [0, 0, 1, 1], [], []>} : vector<32x256xbf16>, vector<256x64xbf16>, vector<32x64xf32> -> vector<32x64xf32>
    %c0_4 = arith.constant 0 : index
    %c0_5 = arith.constant 0 : index
    %5 = vector.load %arg3[%c0_4, %c0_5] : memref<1x64xf32, #tpu.memory_space<vmem>>, vector<1x64xf32>
    %6 = vector.broadcast %5 : vector<1x64xf32> to vector<32x64xf32>
    %7 = arith.addf %4, %6 : vector<32x64xf32>
    %8 = math.tanh %7 : vector<32x64xf32>
    %9 = vector.shape_cast %8 : vector<32x64xf32> to vector<2x16x64xf32>
    %cst_6 = arith.constant 0.000000e+00 : f32
    %10 = vector.broadcast %cst_6 : f32 to vector<2x1x64xf32>
    %11 = vector.extract_strided_slice %9 {offsets = [0, 0, 0], sizes = [2, 15, 64], strides = [1, 1, 1]} : vector<2x16x64xf32> to vector<2x15x64xf32>
    %12 = tpu.concatenate %10, %11 in 1 : vector<2x1x64xf32>, vector<2x15x64xf32> -> vector<2x16x64xf32>
    %13 = vector.extract_strided_slice %9 {offsets = [0, 1, 0], sizes = [2, 15, 64], strides = [1, 1, 1]} : vector<2x16x64xf32> to vector<2x15x64xf32>
    %14 = tpu.concatenate %13, %10 in 1 : vector<2x15x64xf32>, vector<2x1x64xf32> -> vector<2x16x64xf32>
    %15 = vector.shape_cast %12 : vector<2x16x64xf32> to vector<32x64xf32>
    %16 = arith.truncf %15 : vector<32x64xf32> to vector<32x64xbf16>
    %c0_7 = arith.constant 0 : index
    %c0_8 = arith.constant 0 : index
    %c0_9 = arith.constant 0 : index
    %17 = vector.load %arg4[%c0_7, %c0_8, %c0_9] : memref<3x64x64xbf16, #tpu.memory_space<vmem>>, vector<1x64x64xbf16>
    %18 = vector.shape_cast %17 : vector<1x64x64xbf16> to vector<64x64xbf16>
    %cst_10 = arith.constant dense<0.000000e+00> : vector<32x64xf32>
    %19 = tpu.matmul %16, %18, %cst_10 {dimension_numbers = #tpu.dot_dimension_numbers<[1], [0], [0], [1], [0, 0, 1, 1], [], []>} : vector<32x64xbf16>, vector<64x64xbf16>, vector<32x64xf32> -> vector<32x64xf32>
    %20 = vector.shape_cast %9 : vector<2x16x64xf32> to vector<32x64xf32>
    %21 = arith.truncf %20 : vector<32x64xf32> to vector<32x64xbf16>
    %c1 = arith.constant 1 : index
    %c0_11 = arith.constant 0 : index
    %c0_12 = arith.constant 0 : index
    %22 = vector.load %arg4[%c1, %c0_11, %c0_12] : memref<3x64x64xbf16, #tpu.memory_space<vmem>>, vector<1x64x64xbf16>
    %23 = vector.shape_cast %22 : vector<1x64x64xbf16> to vector<64x64xbf16>
    %cst_13 = arith.constant dense<0.000000e+00> : vector<32x64xf32>
    %24 = tpu.matmul %21, %23, %cst_13 {dimension_numbers = #tpu.dot_dimension_numbers<[1], [0], [0], [1], [0, 0, 1, 1], [], []>} : vector<32x64xbf16>, vector<64x64xbf16>, vector<32x64xf32> -> vector<32x64xf32>
    %25 = arith.addf %19, %24 : vector<32x64xf32>
    %26 = vector.shape_cast %14 : vector<2x16x64xf32> to vector<32x64xf32>
    %27 = arith.truncf %26 : vector<32x64xf32> to vector<32x64xbf16>
    %c2 = arith.constant 2 : index
    %c0_14 = arith.constant 0 : index
    %c0_15 = arith.constant 0 : index
    %28 = vector.load %arg4[%c2, %c0_14, %c0_15] : memref<3x64x64xbf16, #tpu.memory_space<vmem>>, vector<1x64x64xbf16>
    %29 = vector.shape_cast %28 : vector<1x64x64xbf16> to vector<64x64xbf16>
    %cst_16 = arith.constant dense<0.000000e+00> : vector<32x64xf32>
    %30 = tpu.matmul %27, %29, %cst_16 {dimension_numbers = #tpu.dot_dimension_numbers<[1], [0], [0], [1], [0, 0, 1, 1], [], []>} : vector<32x64xbf16>, vector<64x64xbf16>, vector<32x64xf32> -> vector<32x64xf32>
    %31 = arith.addf %25, %30 : vector<32x64xf32>
    %c0_17 = arith.constant 0 : index
    %c0_18 = arith.constant 0 : index
    %32 = vector.load %arg5[%c0_17, %c0_18] : memref<1x64xf32, #tpu.memory_space<vmem>>, vector<1x64xf32>
    %33 = vector.broadcast %32 : vector<1x64xf32> to vector<32x64xf32>
    %34 = arith.addf %31, %33 : vector<32x64xf32>
    %35 = math.tanh %34 : vector<32x64xf32>
    %36 = arith.truncf %35 : vector<32x64xf32> to vector<32x64xbf16>
    %c0_19 = arith.constant 0 : index
    %c0_20 = arith.constant 0 : index
    %37 = vector.load %arg6[%c0_19, %c0_20] : memref<64x256xbf16, #tpu.memory_space<vmem>>, vector<64x256xbf16>
    %cst_21 = arith.constant dense<0.000000e+00> : vector<32x256xf32>
    %38 = tpu.matmul %36, %37, %cst_21 {dimension_numbers = #tpu.dot_dimension_numbers<[1], [0], [0], [1], [0, 0, 1, 1], [], []>} : vector<32x64xbf16>, vector<64x256xbf16>, vector<32x256xf32> -> vector<32x256xf32>
    %c0_22 = arith.constant 0 : index
    %c0_23 = arith.constant 0 : index
    %39 = vector.load %arg7[%c0_22, %c0_23] : memref<1x256xf32, #tpu.memory_space<vmem>>, vector<1x256xf32>
    %40 = vector.broadcast %39 : vector<1x256xf32> to vector<32x256xf32>
    %41 = arith.addf %38, %40 : vector<32x256xf32>
    %42 = arith.addf %41, %1 : vector<32x256xf32>
    %43 = math.tanh %42 : vector<32x256xf32>
    %44 = vector.shape_cast %43 : vector<32x256xf32> to vector<2x16x256xf32>
    %c0_24 = arith.constant 0 : index
    %c0_25 = arith.constant 0 : index
    %c0_26 = arith.constant 0 : index
    %45 = vector.load %arg8[%c0_24, %c0_25, %c0_26] : memref<2x16x256xf32, #tpu.memory_space<vmem>>, vector<2x16x256xf32>
    tpu.vector_store %arg8[%c0_24, %c0_25, %c0_26], %44 {strides = array<i32>} : memref<2x16x256xf32, #tpu.memory_space<vmem>>, vector<2x16x256xf32>,
    return
  }
  func.func @transform_0(%arg0: i32) -> (i32, i32, i32) {
    %c0_i32 = arith.constant 0 : i32
    %c0_i32_0 = arith.constant 0 : i32
    %c0_i32_1 = arith.constant 0 : i32
    return %arg0, %c0_i32, %c0_i32_0 : i32, i32, i32
  }
  func.func @transform_1(%arg0: i32) -> (i32, i32) {
    %c0_i32 = arith.constant 0 : i32
    %c0_i32_0 = arith.constant 0 : i32
    %c0_i32_1 = arith.constant 0 : i32
    return %c0_i32, %c0_i32_0 : i32, i32
  }
  func.func @transform_2(%arg0: i32) -> (i32, i32) {
    %c0_i32 = arith.constant 0 : i32
    %c0_i32_0 = arith.constant 0 : i32
    %c0_i32_1 = arith.constant 0 : i32
    return %c0_i32, %c0_i32_0 : i32, i32
  }
  func.func @transform_3(%arg0: i32) -> (i32, i32, i32) {
    %c0_i32 = arith.constant 0 : i32
    %c0_i32_0 = arith.constant 0 : i32
    %c0_i32_1 = arith.constant 0 : i32
    %c0_i32_2 = arith.constant 0 : i32
    return %c0_i32, %c0_i32_0, %c0_i32_1 : i32, i32, i32
  }
  func.func @transform_4(%arg0: i32) -> (i32, i32) {
    %c0_i32 = arith.constant 0 : i32
    %c0_i32_0 = arith.constant 0 : i32
    %c0_i32_1 = arith.constant 0 : i32
    return %c0_i32, %c0_i32_0 : i32, i32
  }
  func.func @transform_5(%arg0: i32) -> (i32, i32) {
    %c0_i32 = arith.constant 0 : i32
    %c0_i32_0 = arith.constant 0 : i32
    %c0_i32_1 = arith.constant 0 : i32
    return %c0_i32, %c0_i32_0 : i32, i32
  }
  func.func @transform_6(%arg0: i32) -> (i32, i32) {
    %c0_i32 = arith.constant 0 : i32
    %c0_i32_0 = arith.constant 0 : i32
    %c0_i32_1 = arith.constant 0 : i32
    return %c0_i32, %c0_i32_0 : i32, i32
  }
  func.func @transform_7(%arg0: i32) -> (i32, i32, i32) {
    %c0_i32 = arith.constant 0 : i32
    %c0_i32_0 = arith.constant 0 : i32
    %c0_i32_1 = arith.constant 0 : i32
    return %arg0, %c0_i32, %c0_i32_0 : i32, i32, i32
  }
}

</mosaic_0001>

<llo_original>
// kernel: tpu_custom_call.1
$region0: #{tpu_custom_call.1}
  #allocation0 [shape = 'u32[]', space=smem, size = 0x4, offset = 0x4, fixed_abs, tag = 'smem constant byte address 0x4 - core index']
  #allocation1 [shape = 'u32[144,128]{1,0:T(1,128)}', space=vmem, size = 0x12000, scoped, tag = 'internal scratch']
  %s0 = inlined_call_operand.vmem [shape: f32[4,16,256], index: 0, kind: input, shape index: {}]
  %s1 = inlined_call_operand.vmem [shape: bf16[256,64], index: 1, kind: input, shape index: {}]
  %s2 = inlined_call_operand.vmem [shape: f32[1,64], index: 2, kind: input, shape index: {}]
  %s3 = inlined_call_operand.hbm [shape: bf16[3,64,64], index: 3, kind: input, shape index: {}]
  %s4 = inlined_call_operand.vmem [shape: f32[1,64], index: 4, kind: input, shape index: {}]
  %s5 = inlined_call_operand.vmem [shape: bf16[64,256], index: 5, kind: input, shape index: {}]
  %s6 = inlined_call_operand.vmem [shape: f32[1,256], index: 6, kind: input, shape index: {}]
  %s7 = inlined_call_operand.hbm [shape: f32[4,16,256], index: 7, kind: output, shape index: {}]
  %s8 = sld [smem:[#allocation0]]
  $region65: #{tpu_custom_call.1} parent=0
    _
  %s10 = ssub.s32 1, %s8
  %s11 = scalar_select 0, %s10, %s8
  $region1: #{tpu_custom_call.1} parent=0
    #allocation2 [shape = 'u8[49152]{0}', space=vmem, size = 0xc000, scoped, tag = 'input window, operand 3, single buffered']
    #allocation3 [shape = 's32[2]{0}', space=sflag, size = 0x8, scoped, tag = 'scoped memory for tpu_custom_call.1']
    #allocation4 [shape = 's32[2]{0}', space=sflag, size = 0x8, scoped, tag = 'scoped memory for tpu_custom_call.1']
    #allocation5 [shape = 'u8[65536]{0}', space=vmem, size = 0x10000, scoped, tag = 'output window, operand 0']
    %12 = vsyncpa [#allocation3], 0
    %13 = vsyncpa [#allocation4], 0
    %s14 = scalar_lea.sflag [#allocation4], 1
    %15 = vsyncpa %s14, 0
    loop: start=0, step=1, limit=4
    $region2: #{tpu_custom_call.1} parent=1 // loop_pre_header
      _
    $region3: #{tpu_custom_call.1} parent=1 // loop_header
      %s17 = sphi 0, %s21
      %p18 = scmp.ge.s32.totalorder %s17, 4
      %s27 = sphi 0, %s29
      %s30 = sphi 0, %s27
      %s31 = sphi 0, %s30
      %s47 = sphi 0, %s31
      %s51 = sphi 0, %s51
      %s53 = sphi 0, %s51
      %s54 = sphi 0, %s53
      %s68 = sphi 0, %s54
      %s72 = sphi 0, %s72
      %s74 = sphi 0, %s72
      %s75 = sphi 0, %s74
      %s89 = sphi 0, %s75
      %s93 = sphi 0, %s93
      %s95 = sphi 0, %s93
      %s96 = sphi 0, %s95
      %s110 = sphi 0, %s96
      %s114 = sphi 0, %s114
      %s116 = sphi 0, %s114
      %s117 = sphi 0, %s116
      %s131 = sphi 0, %s117
      %s135 = sphi 0, %s135
      %s137 = sphi 0, %s135
      %s138 = sphi 0, %s137
      %s152 = sphi 0, %s138
      %s156 = sphi 0, %s156
      %s158 = sphi 0, %s156
      %s159 = sphi 0, %s158
      %s173 = sphi 0, %s159
      %s179 = sphi 0, %s181
      %s182 = sphi 0, %s179
      %s183 = sphi 0, %s182
      %s199 = sphi 0, %s183
    $region4: #{tpu_custom_call.1} parent=1 // loop_header_branch
      %20 = sbr.rel (%p18) target = $region8
    $region5: #{tpu_custom_call.1} parent=1 // loop_body
      %s22 = ssub.s32 %s17, 1
      %s23 = ssub.s32 %s17, 2
      %s24 = sadd.s32 %s17, 1
      %s25 = ssub.s32 %s17, %s24
      %p26 = scmp.eq.s32.totalorder %s25, 0
      %s28 = sadd.s32 %s27, 1
      %s29 = scalar_select %p26, %s27, %s28
      %p32 = pneg %p26
      %p33 = scmp.eq.s32.totalorder %s17, 1
      %p34 = por %p32, %p33
      %p35 = scmp.ne.s32.totalorder %s27, %s30
      %p36 = scmp.eq.s32.totalorder %s17, 0
      %p37 = por %p35, %p36
      %p38 = scmp.ne.s32.totalorder %s27, %s30
      %p39 = scmp.eq.s32.totalorder %s22, 1
      %p40 = por %p38, %p39
      %p41 = scmp.ne.s32.totalorder %s30, %s31
      %p42 = scmp.eq.s32.totalorder %s22, 0
      %p43 = por %p41, %p42
      %p44 = scmp.ne.s32.totalorder %s30, %s31
      %p45 = scmp.eq.s32.totalorder %s23, 1
      %p46 = por %p44, %p45
      %p48 = scmp.ne.s32.totalorder %s31, %s47
      %p49 = scmp.eq.s32.totalorder %s23, 0
      %p50 = por %p48, %p49
      %s52 = sadd.s32 %s51, 1
      %p55 = scmp.eq.s32.totalorder %s17, 1
      %p56 = scmp.ne.s32.totalorder %s51, %s53
      %p57 = scmp.eq.s32.totalorder %s17, 0
      %p58 = por %p56, %p57
      %p59 = scmp.ne.s32.totalorder %s51, %s53
      %p60 = scmp.eq.s32.totalorder %s22, 1
      %p61 = por %p59, %p60
      %p62 = scmp.ne.s32.totalorder %s53, %s54
      %p63 = scmp.eq.s32.totalorder %s22, 0
      %p64 = por %p62, %p63
      %p65 = scmp.ne.s32.totalorder %s53, %s54
      %p66 = scmp.eq.s32.totalorder %s23, 1
      %p67 = por %p65, %p66
      %p69 = scmp.ne.s32.totalorder %s54, %s68
      %p70 = scmp.eq.s32.totalorder %s23, 0
      %p71 = por %p69, %p70
      %s73 = sadd.s32 %s72, 1
      %p76 = scmp.eq.s32.totalorder %s17, 1
      %p77 = scmp.ne.s32.totalorder %s72, %s74
      %p78 = scmp.eq.s32.totalorder %s17, 0
      %p79 = por %p77, %p78
      %p80 = scmp.ne.s32.totalorder %s72, %s74
      %p81 = scmp.eq.s32.totalorder %s22, 1
      %p82 = por %p80, %p81
      %p83 = scmp.ne.s32.totalorder %s74, %s75
      %p84 = scmp.eq.s32.totalorder %s22, 0
      %p85 = por %p83, %p84
      %p86 = scmp.ne.s32.totalorder %s74, %s75
      %p87 = scmp.eq.s32.totalorder %s23, 1
      %p88 = por %p86, %p87
      %p90 = scmp.ne.s32.totalorder %s75, %s89
      %p91 = scmp.eq.s32.totalorder %s23, 0
      %p92 = por %p90, %p91
      %s94 = sadd.s32 %s93, 1
      %p97 = scmp.eq.s32.totalorder %s17, 1
      %p98 = scmp.ne.s32.totalorder %s93, %s95
      %p99 = scmp.eq.s32.totalorder %s17, 0
      %p100 = por %p98, %p99
      %p101 = scmp.ne.s32.totalorder %s93, %s95
      %p102 = scmp.eq.s32.totalorder %s22, 1
      %p103 = por %p101, %p102
      %p104 = scmp.ne.s32.totalorder %s95, %s96
      %p105 = scmp.eq.s32.totalorder %s22, 0
      %p106 = por %p104, %p105
      %p107 = scmp.ne.s32.totalorder %s95, %s96
      %p108 = scmp.eq.s32.totalorder %s23, 1
      %p109 = por %p107, %p108
      %p111 = scmp.ne.s32.totalorder %s96, %s110
      %p112 = scmp.eq.s32.totalorder %s23, 0
      %p113 = por %p111, %p112
      %s115 = sadd.s32 %s114, 1
      %p118 = scmp.eq.s32.totalorder %s17, 1
      %p119 = scmp.ne.s32.totalorder %s114, %s116
      %p120 = scmp.eq.s32.totalorder %s17, 0
      %p121 = por %p119, %p120
      %p122 = scmp.ne.s32.totalorder %s114, %s116
      %p123 = scmp.eq.s32.totalorder %s22, 1
      %p124 = por %p122, %p123
      %p125 = scmp.ne.s32.totalorder %s116, %s117
      %p126 = scmp.eq.s32.totalorder %s22, 0
      %p127 = por %p125, %p126
      %p128 = scmp.ne.s32.totalorder %s116, %s117
      %p129 = scmp.eq.s32.totalorder %s23, 1
      %p130 = por %p128, %p129
      %p132 = scmp.ne.s32.totalorder %s117, %s131
      %p133 = scmp.eq.s32.totalorder %s23, 0
      %p134 = por %p132, %p133
      %s136 = sadd.s32 %s135, 1
      %p139 = scmp.eq.s32.totalorder %s17, 1
      %p140 = scmp.ne.s32.totalorder %s135, %s137
      %p141 = scmp.eq.s32.totalorder %s17, 0
      %p142 = por %p140, %p141
      %p143 = scmp.ne.s32.totalorder %s135, %s137
      %p144 = scmp.eq.s32.totalorder %s22, 1
      %p145 = por %p143, %p144
      %p146 = scmp.ne.s32.totalorder %s137, %s138
      %p147 = scmp.eq.s32.totalorder %s22, 0
      %p148 = por %p146, %p147
      %p149 = scmp.ne.s32.totalorder %s137, %s138
      %p150 = scmp.eq.s32.totalorder %s23, 1
      %p151 = por %p149, %p150
      %p153 = scmp.ne.s32.totalorder %s138, %s152
      %p154 = scmp.eq.s32.totalorder %s23, 0
      %p155 = por %p153, %p154
      %s157 = sadd.s32 %s156, 1
      %p160 = scmp.eq.s32.totalorder %s17, 1
      %p161 = scmp.ne.s32.totalorder %s156, %s158
      %p162 = scmp.eq.s32.totalorder %s17, 0
      %p163 = por %p161, %p162
      %p164 = scmp.ne.s32.totalorder %s156, %s158
      %p165 = scmp.eq.s32.totalorder %s22, 1
      %p166 = por %p164, %p165
      %p167 = scmp.ne.s32.totalorder %s158, %s159
      %p168 = scmp.eq.s32.totalorder %s22, 0
      %p169 = por %p167, %p168
      %p170 = scmp.ne.s32.totalorder %s158, %s159
      %p171 = scmp.eq.s32.totalorder %s23, 1
      %p172 = por %p170, %p171
      %p174 = scmp.ne.s32.totalorder %s159, %s173
      %p175 = scmp.eq.s32.totalorder %s23, 0
      %p176 = por %p174, %p175
      %s177 = ssub.s32 %s17, %s24
      %p178 = scmp.eq.s32.totalorder %s177, 0
      %s180 = sadd.s32 %s179, 1
      %s181 = scalar_select %p178, %s179, %s180
      %p184 = pneg %p178
      %p185 = scmp.eq.s32.totalorder %s17, 1
      %p186 = por %p184, %p185
      %p187 = scmp.ne.s32.totalorder %s179, %s182
      %p188 = scmp.eq.s32.totalorder %s17, 0
      %p189 = por %p187, %p188
      %p190 = scmp.ne.s32.totalorder %s179, %s182
      %p191 = scmp.eq.s32.totalorder %s22, 1
      %p192 = por %p190, %p191
      %p193 = scmp.ne.s32.totalorder %s182, %s183
      %p194 = scmp.eq.s32.totalorder %s22, 0
      %p195 = por %p193, %p194
      %p196 = scmp.ne.s32.totalorder %s182, %s183
      %p197 = scmp.eq.s32.totalorder %s23, 1
      %p198 = por %p196, %p197
      %p200 = scmp.ne.s32.totalorder %s183, %s199
      %p201 = scmp.eq.s32.totalorder %s23, 0
      %p202 = por %p200, %p201
      %p203 = scmp.le.s32.totalorder 1, %s17
      %p204 = scmp.lt.s32.totalorder %s17, 3
      %p205 = pnand %p203, %p204
      %p206 = pneg %p205
      // Predicated region
      $region9: #{tpu_custom_call.1} parent=5 // pred_check
        _
      $region10: #{tpu_custom_call.1} parent=5 // pred_check_branch
        %208 = sbr.rel (%p205) target = $region12
      $region11: #{tpu_custom_call.1} parent=5 // pred_region
        %s209 = ssub.s32 %s17, 1
        // Predicated region
        $region13: #{tpu_custom_call.1} parent=11 // pred_check
          %p210 = pneg %p64
        $region14: #{tpu_custom_call.1} parent=11 // pred_check_branch
          %212 = sbr.rel (%p210) target = $region16
        $region15: #{tpu_custom_call.1} parent=11 // pred_region
          _
        $region16: #{tpu_custom_call.1} parent=11 // pred_fallthru
          _
        // Predicated region
        $region17: #{tpu_custom_call.1} parent=11 // pred_check
          %p213 = pneg %p85
        $region18: #{tpu_custom_call.1} parent=11 // pred_check_branch
          %215 = sbr.rel (%p213) target = $region20
        $region19: #{tpu_custom_call.1} parent=11 // pred_region
          _
        $region20: #{tpu_custom_call.1} parent=11 // pred_fallthru
          _
        // Predicated region
        $region21: #{tpu_custom_call.1} parent=11 // pred_check
          %p216 = pneg %p106
        $region22: #{tpu_custom_call.1} parent=11 // pred_check_branch
          %218 = sbr.rel (%p216) target = $region24
        $region23: #{tpu_custom_call.1} parent=11 // pred_region
          %s220 = ssub.s32 1536, 1536
          %221 = vsyncadd [#allocation3], %s220
          %s222 = sshll.u32 [#allocation2], 4
          %s223 = int_to_ptr.vmem [resolvable:$true] %s222
          %228 = dma.hbm_to_vmem [thread:$0]  %s3, 1536, %s223, [#allocation3], 64, 64, 4
        $region24: #{tpu_custom_call.1} parent=11 // pred_fallthru
          _
        // Predicated region
        $region25: #{tpu_custom_call.1} parent=11 // pred_check
          %p229 = pneg %p127
        $region26: #{tpu_custom_call.1} parent=11 // pred_check_branch
          %231 = sbr.rel (%p229) target = $region28
        $region27: #{tpu_custom_call.1} parent=11 // pred_region
          _
        $region28: #{tpu_custom_call.1} parent=11 // pred_fallthru
          _
        // Predicated region
        $region29: #{tpu_custom_call.1} parent=11 // pred_check
          %p232 = pneg %p148
        $region30: #{tpu_custom_call.1} parent=11 // pred_check_branch
          %234 = sbr.rel (%p232) target = $region32
        $region31: #{tpu_custom_call.1} parent=11 // pred_region
          _
        $region32: #{tpu_custom_call.1} parent=11 // pred_fallthru
          _
        // Predicated region
        $region33: #{tpu_custom_call.1} parent=11 // pred_check
          %p235 = pneg %p169
        $region34: #{tpu_custom_call.1} parent=11 // pred_check_branch
          %237 = sbr.rel (%p235) target = $region36
        $region35: #{tpu_custom_call.1} parent=11 // pred_region
          _
        $region36: #{tpu_custom_call.1} parent=11 // pred_fallthru
          _
      $region12: #{tpu_custom_call.1} parent=5 // pred_fallthru
        _
      %p238 = scmp.lt.s32.totalorder %s17, 2
      // Predicated region
      $region37: #{tpu_custom_call.1} parent=5 // pred_check
        %p239 = pneg %p238
      $region38: #{tpu_custom_call.1} parent=5 // pred_check_branch
        %241 = sbr.rel (%p239) target = $region40
      $region39: #{tpu_custom_call.1} parent=5 // pred_region
        // Predicated region
        $region41: #{tpu_custom_call.1} parent=39 // pred_check
          %p242 = pneg %p37
        $region42: #{tpu_custom_call.1} parent=39 // pred_check_branch
          %244 = sbr.rel (%p242) target = $region44
        $region43: #{tpu_custom_call.1} parent=39 // pred_region
          %s245 = smul.u32 2, %s17
          %p246 = scmp.lt.s32.totalorder %s245, 3
          %s247 = scalar_select %p246, %s245, 3
          %s248 = smul.addr %s247, 4
          %s249 = smul.addr %s248, 8
          %s250 = scalar_lea.vmem %s0, %s249
          %s251 = smul.u32 2, %s17
        $region44: #{tpu_custom_call.1} parent=39 // pred_fallthru
          _
      $region40: #{tpu_custom_call.1} parent=5 // pred_fallthru
        _
      %p252 = scmp.le.s32.totalorder 1, %s17
      %p253 = scmp.lt.s32.totalorder %s17, 3
      %p254 = pnand %p252, %p253
      %p255 = pneg %p254
      // Predicated region
      $region45: #{tpu_custom_call.1} parent=5 // pred_check
        _
      $region46: #{tpu_custom_call.1} parent=5 // pred_check_branch
        %257 = sbr.rel (%p254) target = $region48
      $region47: #{tpu_custom_call.1} parent=5 // pred_region
        %s258 = ssub.s32 %s17, 1
        // Predicated region
        $region49: #{tpu_custom_call.1} parent=47 // pred_check
          %p259 = pneg %p106
        $region50: #{tpu_custom_call.1} parent=47 // pred_check_branch
          %261 = sbr.rel (%p259) target = $region52
        $region51: #{tpu_custom_call.1} parent=47 // pred_region
          %262 = dma.done [#allocation3], 1536
        $region52: #{tpu_custom_call.1} parent=47 // pred_fallthru
          _
        %s263 = smul.u32 2, %s22
        %p264 = scmp.lt.s32.totalorder %s263, 3
        %s265 = scalar_select %p264, %s263, 3
        %s266 = smul.addr %s265, 4
        %s267 = smul.addr %s266, 8
        %s268 = scalar_lea.vmem %s0, %s267
        %p269 = pneg %p43
        %p270 = pneg %p40
        %p271 = pneg %p64
        %p272 = pneg %p61
        %p273 = pneg %p85
        %p274 = pneg %p82
        %p275 = pneg %p106
        %p276 = pneg %p103
        %p277 = pneg %p127
        %p278 = pneg %p124
        %p279 = pneg %p148
        %p280 = pneg %p145
        %p281 = pneg %p169
        %p282 = pneg %p166
        %p283 = pneg %p195
        %p284 = pneg %p192
        %s285 = sand.u32 %s182, 1
        %s286 = scalar_lea.sflag [#allocation4], %s285
        %s287 = sand.u32 %s182, 1
        %s288 = smul.addr %s287, 64
        %s289 = scalar_lea.vmem [#allocation5], %s288
        %s290 = smul.u32 2, %s22
        %p291 = scmp.lt.s32.totalorder %s290, 3
        %s292 = scalar_select %p291, %s290, 3
        %s293 = smul.addr %s292, 4
        %s294 = smul.addr %s293, 8
        %s295 = scalar_lea.vmem %s0, %s294
        %s296 = smul.u32 2, %s22
        %s297 = smul.u32 2, %s22
        %v299 = vld [vmem:[%s295] sm:$0xff]
        %v300 = vld [vmem:[%s295 + $0x8] sm:$0xff]
        %v301 = vld [vmem:[%s295 + $0x10] sm:$0xff]
        %v302 = vld [vmem:[%s295 + $0x18] sm:$0xff]
        %v303 = vld [vmem:[%s295 + $0x20] sm:$0xff]
        %v304 = vld [vmem:[%s295 + $0x28] sm:$0xff]
        %v305 = vld [vmem:[%s295 + $0x30] sm:$0xff]
        %v306 = vld [vmem:[%s295 + $0x38] sm:$0xff]
        %v307 = vpack.c.bf16 %v301, %v299
        %v308 = vpack.c.bf16 %v302, %v300
        %v309 = vpack.c.bf16 %v305, %v303
        %v310 = vpack.c.bf16 %v306, %v304
        %v311 = vld [vmem:[%s1] sm:$0xf]
        %v312 = vld [vmem:[%s1 + $0x4] sm:$0xf]
        %v313 = vld [vmem:[%s1 + $0x8] sm:$0xf]
        %v314 = vld [vmem:[%s1 + $0xc] sm:$0xf]
        %v315 = vld [vmem:[%s1 + $0x10] sm:$0xf]
        %v316 = vld [vmem:[%s1 + $0x14] sm:$0xf]
        %v317 = vld [vmem:[%s1 + $0x18] sm:$0xf]
        %v318 = vld [vmem:[%s1 + $0x1c] sm:$0xf]
        %v319 = vld [vmem:[%s1 + $0x20] sm:$0xf]
        %v320 = vld [vmem:[%s1 + $0x24] sm:$0xf]
        %v321 = vld [vmem:[%s1 + $0x28] sm:$0xf]
        %v322 = vld [vmem:[%s1 + $0x2c] sm:$0xf]
        %v323 = vld [vmem:[%s1 + $0x30] sm:$0xf]
        %v324 = vld [vmem:[%s1 + $0x34] sm:$0xf]
        %v325 = vld [vmem:[%s1 + $0x38] sm:$0xf]
        %v326 = vld [vmem:[%s1 + $0x3c] sm:$0xf]
        %v327 = vld [vmem:[%s1 + $0x40] sm:$0xf]
        %v328 = vld [vmem:[%s1 + $0x44] sm:$0xf]
        %v329 = vld [vmem:[%s1 + $0x48] sm:$0xf]
        %v330 = vld [vmem:[%s1 + $0x4c] sm:$0xf]
        %v331 = vld [vmem:[%s1 + $0x50] sm:$0xf]
        %v332 = vld [vmem:[%s1 + $0x54] sm:$0xf]
        %v333 = vld [vmem:[%s1 + $0x58] sm:$0xf]
        %v334 = vld [vmem:[%s1 + $0x5c] sm:$0xf]
        %v335 = vld [vmem:[%s1 + $0x60] sm:$0xf]
        %v336 = vld [vmem:[%s1 + $0x64] sm:$0xf]
        %v337 = vld [vmem:[%s1 + $0x68] sm:$0xf]
        %v338 = vld [vmem:[%s1 + $0x6c] sm:$0xf]
        %v339 = vld [vmem:[%s1 + $0x70] sm:$0xf]
        %v340 = vld [vmem:[%s1 + $0x74] sm:$0xf]
        %v341 = vld [vmem:[%s1 + $0x78] sm:$0xf]
        %v342 = vld [vmem:[%s1 + $0x7c] sm:$0xf]
        %v343 = vld [vmem:[%s2] sm:$0x1]
        %v345 = vlaneseq
        %v346 = vshrl.u32 %v345, 7
        %v347 = vsub.s32 0, %v346
        %v348 = vrot.slane %v343, %v347
        %v382 = vunpack.c.l.b16 %v311
        %v383 = vunpack.c.l.b16 %v312
        %v384 = vunpack.c.l.b16 %v313
        %v385 = vunpack.c.l.b16 %v314
        %v386 = vunpack.c.l.b16 %v315
        %v387 = vunpack.c.l.b16 %v316
        %v388 = vunpack.c.l.b16 %v317
        %v389 = vunpack.c.l.b16 %v318
        %v390 = vunpack.c.l.b16 %v319
        %v391 = vunpack.c.l.b16 %v320
        %v392 = vunpack.c.l.b16 %v321
        %v393 = vunpack.c.l.b16 %v322
        %v394 = vunpack.c.l.b16 %v323
        %v395 = vunpack.c.l.b16 %v324
        %v396 = vunpack.c.l.b16 %v325
        %v397 = vunpack.c.l.b16 %v326
        %v398 = vunpack.c.l.b16 %v327
        %v399 = vunpack.c.l.b16 %v328
        %v400 = vunpack.c.l.b16 %v329
        %v401 = vunpack.c.l.b16 %v330
        %v402 = vunpack.c.l.b16 %v331
        %v403 = vunpack.c.l.b16 %v332
        %v404 = vunpack.c.l.b16 %v333
        %v405 = vunpack.c.l.b16 %v334
        %v406 = vunpack.c.l.b16 %v335
        %v407 = vunpack.c.l.b16 %v336
        %v408 = vunpack.c.l.b16 %v337
        %v409 = vunpack.c.l.b16 %v338
        %v410 = vunpack.c.l.b16 %v339
        %v411 = vunpack.c.l.b16 %v340
        %v412 = vunpack.c.l.b16 %v341
        %v413 = vunpack.c.l.b16 %v342
        %v414 = vpack.c.b16 %v383, %v382
        %v415 = vpack.c.b16 %v385, %v384
        %v416 = vpack.c.b16 %v387, %v386
        %v417 = vpack.c.b16 %v389, %v388
        %v418 = vpack.c.b16 %v391, %v390
        %v419 = vpack.c.b16 %v393, %v392
        %v420 = vpack.c.b16 %v395, %v394
        %v421 = vpack.c.b16 %v397, %v396
        %v422 = vpack.c.b16 %v399, %v398
        %v423 = vpack.c.b16 %v401, %v400
        %v424 = vpack.c.b16 %v403, %v402
        %v425 = vpack.c.b16 %v405, %v404
        %v426 = vpack.c.b16 %v407, %v406
        %v427 = vpack.c.b16 %v409, %v408
        %v428 = vpack.c.b16 %v411, %v410
        %v429 = vpack.c.b16 %v413, %v412
        %446 = vmatprep.subr.bf16.mxu0 0
        %447 = vmatpush1.bf16.msra.mxu0 %v421
        %448 = vmatprep.subr.bf16.mxu0 0
        %449 = vmatpush1.bf16.msra.mxu0 %v420
        %450 = vmatprep.subr.bf16.mxu0 0
        %451 = vmatpush1.bf16.msra.mxu0 %v419
        %452 = vmatprep.subr.bf16.mxu0 0
        %453 = vmatpush1.bf16.msra.mxu0 %v418
        %454 = vmatprep.subr.bf16.mxu0 0
        %455 = vmatpush1.bf16.msra.mxu0 %v417
        %456 = vmatprep.subr.bf16.mxu0 0
        %457 = vmatpush1.bf16.msra.mxu0 %v416
        %458 = vmatprep.subr.bf16.mxu0 0
        %459 = vmatpush1.bf16.msra.mxu0 %v415
        %460 = vmatprep.subr.bf16.mxu0 0
        %461 = vmatpush1.bf16.msra.mxu0 %v414
        %462 = vmatprep.subr.bf16.mxu0 0
        %463 = vmatpush2.bf16.msra.mxu0 %v429
        %464 = vmatprep.subr.bf16.mxu0 0
        %465 = vmatpush2.bf16.msra.mxu0 %v428
        %466 = vmatprep.subr.bf16.mxu0 0
        %467 = vmatpush2.bf16.msra.mxu0 %v427
        %468 = vmatprep.subr.bf16.mxu0 0
        %469 = vmatpush2.bf16.msra.mxu0 %v426
        %470 = vmatprep.subr.bf16.mxu0 0
        %471 = vmatpush2.bf16.msra.mxu0 %v425
        %472 = vmatprep.subr.bf16.mxu0 0
        %473 = vmatpush2.bf16.msra.mxu0 %v424
        %474 = vmatprep.subr.bf16.mxu0 0
        %475 = vmatpush2.bf16.msra.mxu0 %v423
        %476 = vmatprep.subr.bf16.mxu0 0
        %477 = vmatpush2.bf16.msra.mxu0 %v422
        %478 = vmatprep.mubr.bf16.mxu0 %v308
        %479 = vmatmul.mubr.bf16.gmra.mxu0 %v307
        %v480 = vpop.f32.mrf.mxu0
        %v481 = vadd.f32 %v348, %v480
        %v482 = vpop.f32.mrf.mxu0
        %v483 = vpop.f32.mrf.mxu0
        %v484 = vadd.f32 %v348, %v483
        %v485 = vpop.f32.mrf.mxu0
        %486 = vmatprep.mubr.bf16.mxu0 %v310
        %487 = vmatmul.mubr.bf16.gmra.mxu0 %v309
        %v488 = vpop.f32.mrf.mxu0
        %v489 = vadd.f32 %v348, %v488
        %v490 = vpop.f32.mrf.mxu0
        %v491 = vpop.f32.mrf.mxu0
        %v492 = vadd.f32 %v348, %v491
        %v493 = vpop.f32.mrf.mxu0
        %494 = vdwg.mxu0
        %v495 = vtanh.pop %v481
        %v496 = vtanh.pop %v484
        %v497 = vtanh.pop %v489
        %v498 = vtanh.pop %v492
        %vm503 = vcmask 1040384
        %v504 = vrot.slane %v495, 7
        %v505 = vrot.slane %v496, 7
        %v506 = vsel %vm503, %v504, %v505
        %v507 = vrot.slane %v497, 7
        %v508 = vrot.slane %v498, 7
        %v509 = vsel %vm503, %v507, %v508
        %v514 = vsel %vm503, 0.0, %v504
        %v515 = vsel %vm503, 0.0, %v507
        %vm516 = vcmask 1046528
        %v517 = vrot.slane %v495, 1
        %v518 = vrot.slane %v496, 1
        %v519 = vsel %vm516, %v517, %v518
        %v520 = vrot.slane %v497, 1
        %v521 = vrot.slane %v498, 1
        %v522 = vsel %vm516, %v520, %v521
        %v527 = vsel %vm516, %v518, 0.0
        %v528 = vsel %vm516, %v521, 0.0
        %v529 = vpack.c.bf16 %v506, %v514
        %v530 = vpack.c.bf16 %v509, %v515
        %v531 = vld [vmem:[#allocation2] sm:$0xf]
        %v532 = vld [vmem:[#allocation2 + $0x4] sm:$0xf]
        %v533 = vld [vmem:[#allocation2 + $0x8] sm:$0xf]
        %v534 = vld [vmem:[#allocation2 + $0xc] sm:$0xf]
        %v535 = vld [vmem:[#allocation2 + $0x10] sm:$0xf]
        %v536 = vld [vmem:[#allocation2 + $0x14] sm:$0xf]
        %v537 = vld [vmem:[#allocation2 + $0x18] sm:$0xf]
        %v538 = vld [vmem:[#allocation2 + $0x1c] sm:$0xf]
        %v539 = vpack.c.bf16 %v496, %v495
        %v540 = vpack.c.bf16 %v498, %v497
        %s541 = scalar_lea.vmem [#allocation2], 32
        %v542 = vld [vmem:[%s541] sm:$0xf]
        %v543 = vld [vmem:[%s541 + $0x4] sm:$0xf]
        %v544 = vld [vmem:[%s541 + $0x8] sm:$0xf]
        %v545 = vld [vmem:[%s541 + $0xc] sm:$0xf]
        %v546 = vld [vmem:[%s541 + $0x10] sm:$0xf]
        %v547 = vld [vmem:[%s541 + $0x14] sm:$0xf]
        %v548 = vld [vmem:[%s541 + $0x18] sm:$0xf]
        %v549 = vld [vmem:[%s541 + $0x1c] sm:$0xf]
        %v558 = vunpack.c.l.b16 %v542
        %v559 = vunpack.c.l.b16 %v543
        %v560 = vunpack.c.l.b16 %v544
        %v561 = vunpack.c.l.b16 %v545
        %v562 = vunpack.c.l.b16 %v546
        %v563 = vunpack.c.l.b16 %v547
        %v564 = vunpack.c.l.b16 %v548
        %v565 = vunpack.c.l.b16 %v549
        %v566 = vpack.c.b16 %v559, %v558
        %v567 = vpack.c.b16 %v561, %v560
        %v568 = vpack.c.b16 %v563, %v562
        %v569 = vpack.c.b16 %v565, %v564
        %vm574 = vcmask 523264
        %v576 = vsel %vm574, %v539, 0
        %v579 = vsel %vm574, %v540, 0
        %581 = vmatprep.subr.bf16.mxu0 0
        %582 = vmatpush1.bf16.msra.mxu0 0
        %583 = vmatprep.subr.bf16.mxu0 0
        %584 = vmatpush1.bf16.msra.mxu0 0
        %585 = vmatprep.subr.bf16.mxu0 0
        %586 = vmatpush1.bf16.msra.mxu0 0
        %587 = vmatprep.subr.bf16.mxu0 0
        %588 = vmatpush1.bf16.msra.mxu0 0
        %589 = vmatprep.subr.bf16.mxu0 0
        %590 = vmatpush1.bf16.msra.mxu0 %v569
        %591 = vmatprep.subr.bf16.mxu0 0
        %592 = vmatpush1.bf16.msra.mxu0 %v568
        %593 = vmatprep.subr.bf16.mxu0 0
        %594 = vmatpush1.bf16.msra.mxu0 %v567
        %595 = vmatprep.subr.bf16.mxu0 0
        %596 = vmatpush1.bf16.msra.mxu0 %v566
        %597 = vmatprep.subr.bf16.mxu0 0
        %598 = vmatpush2.bf16.msra.mxu0 0
        %599 = vmatprep.subr.bf16.mxu0 0
        %600 = vmatpush2.bf16.msra.mxu0 0
        %601 = vmatprep.subr.bf16.mxu0 0
        %602 = vmatpush2.bf16.msra.mxu0 0
        %603 = vmatprep.subr.bf16.mxu0 0
        %604 = vmatpush2.bf16.msra.mxu0 0
        %605 = vmatprep.subr.bf16.mxu0 0
        %606 = vmatpush2.bf16.msra.mxu0 0
        %607 = vmatprep.subr.bf16.mxu0 0
        %608 = vmatpush2.bf16.msra.mxu0 0
        %609 = vmatprep.subr.bf16.mxu0 0
        %610 = vmatpush2.bf16.msra.mxu0 0
        %611 = vmatprep.subr.bf16.mxu0 0
        %612 = vmatpush2.bf16.msra.mxu0 0
        %613 = vmatprep.mubr.bf16.mxu0 0
        %614 = vmatmul.mubr.bf16.gmra.mxu0 %v576
        %v615 = vpop.f32.mrf.mxu0
        %v616 = vadd.f32 0.0, %v615
        %v617 = vpop.f32.mrf.mxu0
        %v618 = vpop.f32.mrf.mxu0
        %v619 = vadd.f32 0.0, %v618
        %v620 = vpop.f32.mrf.mxu0
        %621 = vmatprep.mubr.bf16.mxu0 0
        %622 = vmatmul.mubr.bf16.gmra.mxu0 %v579
        %v623 = vpop.f32.mrf.mxu0
        %v624 = vadd.f32 0.0, %v623
        %v625 = vpop.f32.mrf.mxu0
        %v626 = vpop.f32.mrf.mxu0
        %v627 = vadd.f32 0.0, %v626
        %v628 = vpop.f32.mrf.mxu0
        %629 = vdwg.mxu0
        %v638 = vunpack.c.l.b16 %v531
        %v639 = vunpack.c.l.b16 %v532
        %v640 = vunpack.c.l.b16 %v533
        %v641 = vunpack.c.l.b16 %v534
        %v642 = vunpack.c.l.b16 %v535
        %v643 = vunpack.c.l.b16 %v536
        %v644 = vunpack.c.l.b16 %v537
        %v645 = vunpack.c.l.b16 %v538
        %v646 = vpack.c.b16 %v639, %v638
        %v647 = vpack.c.b16 %v641, %v640
        %v648 = vpack.c.b16 %v643, %v642
        %v649 = vpack.c.b16 %v645, %v644
        %v655 = vsel %vm574, %v529, 0
        %v658 = vsel %vm574, %v530, 0
        %660 = vmatprep.subr.bf16.mxu0 0
        %661 = vmatpush1.bf16.msra.mxu0 0
        %662 = vmatprep.subr.bf16.mxu0 0
        %663 = vmatpush1.bf16.msra.mxu0 0
        %664 = vmatprep.subr.bf16.mxu0 0
        %665 = vmatpush1.bf16.msra.mxu0 0
        %666 = vmatprep.subr.bf16.mxu0 0
        %667 = vmatpush1.bf16.msra.mxu0 0
        %668 = vmatprep.subr.bf16.mxu0 0
        %669 = vmatpush1.bf16.msra.mxu0 %v649
        %670 = vmatprep.subr.bf16.mxu0 0
        %671 = vmatpush1.bf16.msra.mxu0 %v648
        %672 = vmatprep.subr.bf16.mxu0 0
        %673 = vmatpush1.bf16.msra.mxu0 %v647
        %674 = vmatprep.subr.bf16.mxu0 0
        %675 = vmatpush1.bf16.msra.mxu0 %v646
        %676 = vmatprep.subr.bf16.mxu0 0
        %677 = vmatpush2.bf16.msra.mxu0 0
        %678 = vmatprep.subr.bf16.mxu0 0
        %679 = vmatpush2.bf16.msra.mxu0 0
        %680 = vmatprep.subr.bf16.mxu0 0
        %681 = vmatpush2.bf16.msra.mxu0 0
        %682 = vmatprep.subr.bf16.mxu0 0
        %683 = vmatpush2.bf16.msra.mxu0 0
        %684 = vmatprep.subr.bf16.mxu0 0
        %685 = vmatpush2.bf16.msra.mxu0 0
        %686 = vmatprep.subr.bf16.mxu0 0
        %687 = vmatpush2.bf16.msra.mxu0 0
        %688 = vmatprep.subr.bf16.mxu0 0
        %689 = vmatpush2.bf16.msra.mxu0 0
        %690 = vmatprep.subr.bf16.mxu0 0
        %691 = vmatpush2.bf16.msra.mxu0 0
        %692 = vmatprep.mubr.bf16.mxu0 0
        %693 = vmatmul.mubr.bf16.gmra.mxu0 %v655
        %v694 = vpop.f32.mrf.mxu0
        %v695 = vadd.f32 %v616, %v694
        %v696 = vpop.f32.mrf.mxu0
        %v697 = vpop.f32.mrf.mxu0
        %v698 = vadd.f32 %v619, %v697
        %v699 = vpop.f32.mrf.mxu0
        %700 = vmatprep.mubr.bf16.mxu0 0
        %701 = vmatmul.mubr.bf16.gmra.mxu0 %v658
        %v702 = vpop.f32.mrf.mxu0
        %v703 = vadd.f32 %v624, %v702
        %v704 = vpop.f32.mrf.mxu0
        %v705 = vpop.f32.mrf.mxu0
        %v706 = vadd.f32 %v627, %v705
        %v707 = vpop.f32.mrf.mxu0
        %708 = vdwg.mxu0
        %v709 = vpack.c.bf16 %v527, %v519
        %v710 = vpack.c.bf16 %v528, %v522
        %s711 = scalar_lea.vmem [#allocation2], 64
        %v712 = vld [vmem:[%s711] sm:$0xf]
        %v713 = vld [vmem:[%s711 + $0x4] sm:$0xf]
        %v714 = vld [vmem:[%s711 + $0x8] sm:$0xf]
        %v715 = vld [vmem:[%s711 + $0xc] sm:$0xf]
        %v716 = vld [vmem:[%s711 + $0x10] sm:$0xf]
        %v717 = vld [vmem:[%s711 + $0x14] sm:$0xf]
        %v718 = vld [vmem:[%s711 + $0x18] sm:$0xf]
        %v719 = vld [vmem:[%s711 + $0x1c] sm:$0xf]
        %v728 = vunpack.c.l.b16 %v712
        %v729 = vunpack.c.l.b16 %v713
        %v730 = vunpack.c.l.b16 %v714
        %v731 = vunpack.c.l.b16 %v715
        %v732 = vunpack.c.l.b16 %v716
        %v733 = vunpack.c.l.b16 %v717
        %v734 = vunpack.c.l.b16 %v718
        %v735 = vunpack.c.l.b16 %v719
        %v736 = vpack.c.b16 %v729, %v728
        %v737 = vpack.c.b16 %v731, %v730
        %v738 = vpack.c.b16 %v733, %v732
        %v739 = vpack.c.b16 %v735, %v734
        %v745 = vsel %vm574, %v709, 0
        %v748 = vsel %vm574, %v710, 0
        %750 = vmatprep.subr.bf16.mxu0 0
        %751 = vmatpush1.bf16.msra.mxu0 0
        %752 = vmatprep.subr.bf16.mxu0 0
        %753 = vmatpush1.bf16.msra.mxu0 0
        %754 = vmatprep.subr.bf16.mxu0 0
        %755 = vmatpush1.bf16.msra.mxu0 0
        %756 = vmatprep.subr.bf16.mxu0 0
        %757 = vmatpush1.bf16.msra.mxu0 0
        %758 = vmatprep.subr.bf16.mxu0 0
        %759 = vmatpush1.bf16.msra.mxu0 %v739
        %760 = vmatprep.subr.bf16.mxu0 0
        %761 = vmatpush1.bf16.msra.mxu0 %v738
        %762 = vmatprep.subr.bf16.mxu0 0
        %763 = vmatpush1.bf16.msra.mxu0 %v737
        %764 = vmatprep.subr.bf16.mxu0 0
        %765 = vmatpush1.bf16.msra.mxu0 %v736
        %766 = vmatprep.subr.bf16.mxu0 0
        %767 = vmatpush2.bf16.msra.mxu0 0
        %768 = vmatprep.subr.bf16.mxu0 0
        %769 = vmatpush2.bf16.msra.mxu0 0
        %770 = vmatprep.subr.bf16.mxu0 0
        %771 = vmatpush2.bf16.msra.mxu0 0
        %772 = vmatprep.subr.bf16.mxu0 0
        %773 = vmatpush2.bf16.msra.mxu0 0
        %774 = vmatprep.subr.bf16.mxu0 0
        %775 = vmatpush2.bf16.msra.mxu0 0
        %776 = vmatprep.subr.bf16.mxu0 0
        %777 = vmatpush2.bf16.msra.mxu0 0
        %778 = vmatprep.subr.bf16.mxu0 0
        %779 = vmatpush2.bf16.msra.mxu0 0
        %780 = vmatprep.subr.bf16.mxu0 0
        %781 = vmatpush2.bf16.msra.mxu0 0
        %782 = vmatprep.mubr.bf16.mxu0 0
        %783 = vmatmul.mubr.bf16.gmra.mxu0 %v745
        %v784 = vpop.f32.mrf.mxu0
        %v785 = vadd.f32 0.0, %v784
        %v786 = vpop.f32.mrf.mxu0
        %v787 = vpop.f32.mrf.mxu0
        %v788 = vadd.f32 0.0, %v787
        %v789 = vpop.f32.mrf.mxu0
        %790 = vmatprep.mubr.bf16.mxu0 0
        %791 = vmatmul.mubr.bf16.gmra.mxu0 %v748
        %v792 = vpop.f32.mrf.mxu0
        %v793 = vadd.f32 0.0, %v792
        %v794 = vpop.f32.mrf.mxu0
        %v795 = vpop.f32.mrf.mxu0
        %v796 = vadd.f32 0.0, %v795
        %v797 = vpop.f32.mrf.mxu0
        %798 = vdwg.mxu0
        %v799 = vadd.f32 %v695, %v785
        %v800 = vadd.f32 %v698, %v788
        %v801 = vadd.f32 %v703, %v793
        %v802 = vadd.f32 %v706, %v796
        %v803 = vld [vmem:[%s4] sm:$0x1]
        %v805 = vlaneseq
        %v806 = vshrl.u32 %v805, 7
        %v807 = vsub.s32 0, %v806
        %v808 = vrot.slane %v803, %v807
        %v810 = vadd.f32 %v799, %v808
        %v811 = vadd.f32 %v800, %v808
        %v812 = vadd.f32 %v801, %v808
        %v813 = vadd.f32 %v802, %v808
        %v814 = vtanh.pop %v810
        %v815 = vtanh.pop %v811
        %v816 = vtanh.pop %v812
        %v817 = vtanh.pop %v813
        %v818 = vpack.c.bf16 %v815, %v814
        %v819 = vpack.c.bf16 %v817, %v816
        %v820 = vld [vmem:[%s5] sm:$0xff]
        %v821 = vld [vmem:[%s5 + $0x8] sm:$0xff]
        %v822 = vld [vmem:[%s5 + $0x10] sm:$0xff]
        %v823 = vld [vmem:[%s5 + $0x18] sm:$0xff]
        %v824 = vld [vmem:[%s5 + $0x20] sm:$0xff]
        %v825 = vld [vmem:[%s5 + $0x28] sm:$0xff]
        %v826 = vld [vmem:[%s5 + $0x30] sm:$0xff]
        %v827 = vld [vmem:[%s5 + $0x38] sm:$0xff]
        %v828 = vld [vmem:[%s6] sm:$0x3]
        %v830 = vlaneseq
        %v831 = vshrl.u32 %v830, 7
        %v832 = vsub.s32 0, %v831
        %v833 = vrot.slane %v828, %v832
        %v834 = vlaneseq
        %v835 = vshrl.u32 %v834, 7
        %v836 = vsub.s32 1, %v835
        %v837 = vrot.slane %v828, %v836
        %v848 = vunpack.c.l.b16 %v820
        %v849 = vunpack.c.h.b16 %v820
        %v850 = vunpack.c.l.b16 %v821
        %v851 = vunpack.c.h.b16 %v821
        %v852 = vunpack.c.l.b16 %v822
        %v853 = vunpack.c.h.b16 %v822
        %v854 = vunpack.c.l.b16 %v823
        %v855 = vunpack.c.h.b16 %v823
        %v856 = vunpack.c.l.b16 %v824
        %v857 = vunpack.c.h.b16 %v824
        %v858 = vunpack.c.l.b16 %v825
        %v859 = vunpack.c.h.b16 %v825
        %v860 = vunpack.c.l.b16 %v826
        %v861 = vunpack.c.h.b16 %v826
        %v862 = vunpack.c.l.b16 %v827
        %v863 = vunpack.c.h.b16 %v827
        %v864 = vpack.c.b16 %v850, %v848
        %v865 = vpack.c.b16 %v851, %v849
        %v866 = vpack.c.b16 %v854, %v852
        %v867 = vpack.c.b16 %v855, %v853
        %v868 = vpack.c.b16 %v858, %v856
        %v869 = vpack.c.b16 %v859, %v857
        %v870 = vpack.c.b16 %v862, %v860
        %v871 = vpack.c.b16 %v863, %v861
        %v881 = vsel %vm574, %v818, 0
        %v884 = vsel %vm574, %v819, 0
        %886 = vmatprep.subr.bf16.mxu0 0
        %887 = vmatpush1.bf16.msra.mxu0 0
        %888 = vmatprep.subr.bf16.mxu0 0
        %889 = vmatpush1.bf16.msra.mxu0 0
        %890 = vmatprep.subr.bf16.mxu0 0
        %891 = vmatpush1.bf16.msra.mxu0 0
        %892 = vmatprep.subr.bf16.mxu0 0
        %893 = vmatpush1.bf16.msra.mxu0 0
        %894 = vmatprep.subr.bf16.mxu0 %v871
        %895 = vmatpush1.bf16.msra.mxu0 %v870
        %896 = vmatprep.subr.bf16.mxu0 %v869
        %897 = vmatpush1.bf16.msra.mxu0 %v868
        %898 = vmatprep.subr.bf16.mxu0 %v867
        %899 = vmatpush1.bf16.msra.mxu0 %v866
        %900 = vmatprep.subr.bf16.mxu0 %v865
        %901 = vmatpush1.bf16.msra.mxu0 %v864
        %902 = vmatprep.subr.bf16.mxu0 0
        %903 = vmatpush2.bf16.msra.mxu0 0
        %904 = vmatprep.subr.bf16.mxu0 0
        %905 = vmatpush2.bf16.msra.mxu0 0
        %906 = vmatprep.subr.bf16.mxu0 0
        %907 = vmatpush2.bf16.msra.mxu0 0
        %908 = vmatprep.subr.bf16.mxu0 0
        %909 = vmatpush2.bf16.msra.mxu0 0
        %910 = vmatprep.subr.bf16.mxu0 0
        %911 = vmatpush2.bf16.msra.mxu0 0
        %912 = vmatprep.subr.bf16.mxu0 0
        %913 = vmatpush2.bf16.msra.mxu0 0
        %914 = vmatprep.subr.bf16.mxu0 0
        %915 = vmatpush2.bf16.msra.mxu0 0
        %916 = vmatprep.subr.bf16.mxu0 0
        %917 = vmatpush2.bf16.msra.mxu0 0
        %918 = vmatprep.mubr.bf16.mxu0 0
        %919 = vmatmul.mubr.bf16.gmra.mxu0 %v881
        %v920 = vpop.f32.mrf.mxu0
        %v921 = vadd.f32 %v833, %v920
        %v922 = vpop.f32.mrf.mxu0
        %v923 = vadd.f32 %v837, %v922
        %v924 = vpop.f32.mrf.mxu0
        %v925 = vadd.f32 %v833, %v924
        %v926 = vpop.f32.mrf.mxu0
        %v927 = vadd.f32 %v837, %v926
        %928 = vmatprep.mubr.bf16.mxu0 0
        %929 = vmatmul.mubr.bf16.gmra.mxu0 %v884
        %v930 = vpop.f32.mrf.mxu0
        %v931 = vadd.f32 %v833, %v930
        %v932 = vpop.f32.mrf.mxu0
        %v933 = vadd.f32 %v837, %v932
        %v934 = vpop.f32.mrf.mxu0
        %v935 = vadd.f32 %v833, %v934
        %v936 = vpop.f32.mrf.mxu0
        %v937 = vadd.f32 %v837, %v936
        %938 = vdwg.mxu0
        %v939 = vadd.f32 %v921, %v299
        %v940 = vadd.f32 %v923, %v300
        %v941 = vadd.f32 %v925, %v301
        %v942 = vadd.f32 %v927, %v302
        %v943 = vadd.f32 %v931, %v303
        %v944 = vadd.f32 %v933, %v304
        %v945 = vadd.f32 %v935, %v305
        %v946 = vadd.f32 %v937, %v306
        %v947 = vtanh.pop %v939
        %v948 = vtanh.pop %v940
        %v949 = vtanh.pop %v941
        %v950 = vtanh.pop %v942
        %v951 = vtanh.pop %v943
        %v952 = vtanh.pop %v944
        %v953 = vtanh.pop %v945
        %v954 = vtanh.pop %v946
        %955 = vst [vmem:[%s289] sm:$0xff] %v947
        %956 = vst [vmem:[%s289 + $0x8] sm:$0xff] %v948
        %957 = vst [vmem:[%s289 + $0x10] sm:$0xff] %v949
        %958 = vst [vmem:[%s289 + $0x18] sm:$0xff] %v950
        %959 = vst [vmem:[%s289 + $0x20] sm:$0xff] %v951
        %960 = vst [vmem:[%s289 + $0x28] sm:$0xff] %v952
        %961 = vst [vmem:[%s289 + $0x30] sm:$0xff] %v953
        %962 = vst [vmem:[%s289 + $0x38] sm:$0xff] %v954
        %s963 = sand.u32 %s182, 1
        %s964 = scalar_lea.sflag [#allocation4], %s963
        %s965 = sand.u32 %s182, 1
        %s966 = smul.addr %s965, 64
        %s967 = scalar_lea.vmem [#allocation5], %s966
        // Predicated region
        $region53: #{tpu_custom_call.1} parent=47 // pred_check
          %p968 = pneg %p192
        $region54: #{tpu_custom_call.1} parent=47 // pred_check_branch
          %970 = sbr.rel (%p968) target = $region56
        $region55: #{tpu_custom_call.1} parent=47 // pred_region
          %s971 = smul.u32 2, %s22
          %s973 = ssub.s32 1024, 1024
          %974 = vsyncadd %s964, %s973
          %s975 = smul.addr %s971, 4
          %s976 = smul.addr %s975, 128
          %s977 = scalar_lea.hbm %s7, %s976
          %s978 = sshll.u32 %s967, 4
          %s979 = int_to_ptr.vmem [resolvable:$true] %s978
          %984 = dma.vmem_to_hbm [thread:$0]  %s979, 1024, %s977, %s964, 256, 256, 16
        $region56: #{tpu_custom_call.1} parent=47 // pred_fallthru
          _
      $region48: #{tpu_custom_call.1} parent=5 // pred_fallthru
        _
      %p985 = scmp.le.s32.totalorder 2, %s17
      // Predicated region
      $region57: #{tpu_custom_call.1} parent=5 // pred_check
        %p986 = pneg %p985
      $region58: #{tpu_custom_call.1} parent=5 // pred_check_branch
        %988 = sbr.rel (%p986) target = $region60
      $region59: #{tpu_custom_call.1} parent=5 // pred_region
        %s989 = ssub.s32 %s17, 2
        // Predicated region
        $region61: #{tpu_custom_call.1} parent=59 // pred_check
          %p990 = pneg %p198
        $region62: #{tpu_custom_call.1} parent=59 // pred_check_branch
          %992 = sbr.rel (%p990) target = $region64
        $region63: #{tpu_custom_call.1} parent=59 // pred_region
          %s993 = sand.u32 %s183, 1
          %s994 = scalar_lea.sflag [#allocation4], %s993
          %s995 = sand.u32 %s183, 1
          %s996 = smul.addr %s995, 64
          %s997 = scalar_lea.vmem [#allocation5], %s996
          %998 = dma.done %s994, 1024
        $region64: #{tpu_custom_call.1} parent=59 // pred_fallthru
          _
      $region60: #{tpu_custom_call.1} parent=5 // pred_fallthru
        _
    $region6: #{tpu_custom_call.1} parent=1 // loop_footer
      %s21 = sadd.s32 1, %s17
    $region7: #{tpu_custom_call.1} parent=1 // loop_footer_branch
      %16 = sbr.rel target = $region3
    $region8: #{tpu_custom_call.1} parent=1 // loop_exit
      _
    %999 = vsyncpa [#allocation3], 1
    %s1000 = scalar_lea.sflag [#allocation3], 1
    %1001 = vsyncpa %s1000, 1
    %1002 = vsyncpa [#allocation4], 1
    %s1003 = scalar_lea.sflag [#allocation4], 1
    %1004 = vsyncpa %s1003, 1

</llo_original>
